<compile_context>
chip_gen: v6e
topology: v6e:2x2x1
jax: 0.10.0
libtpu: 0.0.40
codegen_flags: <defaults>
</compile_context>

<pallas_src>
import functools

import jax
import jax.numpy as jnp
from jax.experimental import pallas as pl
from jax.experimental.pallas import tpu as pltpu


def _mean_pool_kernel(x_ref, o_ref, acc_ref, *, start, end, ts, s0, inv_n,
                      needs_mask):
    """x_ref: (Bt, ts, Ht) token tile; o_ref/acc_ref: (Bt, Ht)."""
    s = pl.program_id(2)

    @pl.when(s == 0)
    def _():
        acc_ref[...] = jnp.zeros_like(acc_ref)

    x32 = x_ref[...].astype(jnp.float32)
    if needs_mask:
        # Global token index of each sublane row of this tile.
        base = (s0 + s) * ts
        row = jax.lax.broadcasted_iota(jnp.int32, x32.shape, 1) + base
        # jnp.where (select, not multiply) so undefined data in the ragged
        # tail of the last block cannot contaminate the sum.
        x32 = jnp.where((row >= start) & (row < end), x32, 0.0)
    acc_ref[...] += jnp.sum(x32, axis=1)

    @pl.when(s == pl.num_programs(2) - 1)
    def _():
        o_ref[...] = (acc_ref[...] * inv_n).astype(o_ref.dtype)


def _round_down(x: int, m: int) -> int:
    return (x // m) * m


def _round_up(x: int, m: int) -> int:
    return -(-x // m) * m


def token_mean_pooling(
    x: jnp.ndarray,
    start_idx: int = 0,
    end_idx: int | None = None,
    *,
    tile_budget_bytes: int = 4 * 1024 * 1024,
    h_tile: int = 2048,
) -> jnp.ndarray:
    """Mean-pool tokens x[:, start_idx:end_idx, :] over dim 1. Returns (B, H)."""
    B, S, H = x.shape
    # Normalize the range with Python slice semantics (negatives, clamping).
    start, end, _ = slice(start_idx, end_idx).indices(S)
    span = end - start
    assert span > 0, "selected token range must be non-empty"

    itemsize = jnp.dtype(x.dtype).itemsize
    # Sublane packing per dtype: 8 (f32/i32), 16 (bf16/f16), 32 (int8/fp8).
    pack = 8 * max(1, 4 // itemsize)
    LANE = 128

    # --- Hidden-dim tile: only split when H is large and 128-aligned. -------
    Ht = h_tile if (H % LANE == 0 and H > h_tile) else H

    # --- Batch tile: sublane-dense output stores when B allows. -------------
    Bt = pack if B >= pack else B

    # --- Token tile: byte budget per (double-buffered) input tile. ----------
    if S <= pack:
        ts = S                                        # full extent is legal
    else:
        ts = tile_budget_bytes // max(1, Bt * Ht * itemsize)
        ts = max(pack, _round_down(ts, pack))
        ts = min(ts, _round_down(S, pack))            # keep block start in-bounds
        ts = min(ts, _round_up(span, pack))           # don't over-cover short ranges
        ts = max(ts, pack)

    # S blocks that overlap [start, end); the index_map is offset by s0 so we
    # never stream tokens that lie entirely outside the selected range.
    s0 = start // ts
    e0 = (end - 1) // ts
    n_s = e0 - s0 + 1
    # Mask only needed when the range isn't tile-aligned (offset start inside
    # the first block, or a ragged tail in the last block).
    needs_mask = (start % ts != 0) or (end % ts != 0)

    grid = (pl.cdiv(B, Bt), pl.cdiv(H, Ht), n_s)

    kernel = functools.partial(
        _mean_pool_kernel,
        start=start, end=end, ts=ts, s0=s0,
        inv_n=1.0 / float(span), needs_mask=needs_mask,
    )

    # VMEM: double-buffered input tile + output tile buffers + f32 accumulator.
    in_tile_bytes = Bt * ts * Ht * itemsize
    out_tile_bytes = Bt * Ht * itemsize
    acc_bytes = Bt * Ht * 4
    vmem_need = 2 * in_tile_bytes + 2 * out_tile_bytes + acc_bytes
    vmem_limit = int(min(48 << 20, max(16 << 20, 2 * vmem_need)))

    cost = pl.CostEstimate(
        flops=B * span * H,                            # the accumulate adds
        transcendentals=0,
        bytes_accessed=B * span * H * itemsize + B * H * itemsize,
    )

    # TODO(synk): on v7x with tiny B (1-2), split the token range across the two
    # TensorCores (CORE_PARALLEL / core_map) so both stream HBM concurrently.
    return pl.pallas_call(
        kernel,
        out_shape=jax.ShapeDtypeStruct((B, H), x.dtype),
        grid_spec=pltpu.PrefetchScalarGridSpec(
            num_scalar_prefetch=0,
            grid=grid,
            in_specs=[pl.BlockSpec((Bt, ts, Ht), lambda b, h, s: (b, s0 + s, h))],
            out_specs=pl.BlockSpec((Bt, Ht), lambda b, h, s: (b, h)),
            scratch_shapes=[pltpu.VMEM((Bt, Ht), jnp.float32)],
        ),
        compiler_params=pltpu.CompilerParams(
            dimension_semantics=("parallel", "parallel", "arbitrary"),
            vmem_limit_bytes=vmem_limit,
        ),
        cost_estimate=cost,
    )(x)


if __name__ == "__main__":
    key = jax.random.PRNGKey(0)
    # Small token tensor: batch=2, seq=8, hidden=32.
    x = jax.random.normal(key, (2, 8, 32), dtype=jnp.float32)

    # Case 1: end_idx=None (pool tokens 1..S-1) — offset start inside one tile.
    y1 = jax.block_until_ready(token_mean_pooling(x, start_idx=1, end_idx=None))
    ref1 = jnp.mean(x[:, 1:, :], axis=1)
    assert y1.shape == (2, 32) and y1.dtype == x.dtype
    assert jnp.allclose(y1, ref1, atol=1e-5, rtol=1e-5)

    # Case 2: explicit end_idx (pool tokens 0..5) — ragged tail masked.
    y2 = jax.block_until_ready(token_mean_pooling(x, start_idx=0, end_idx=6))
    ref2 = jnp.mean(x[:, 0:6, :], axis=1)
    assert jnp.allclose(y2, ref2, atol=1e-5, rtol=1e-5)

    # Case 3: tile-offset range on a slightly larger shape (exercises the
    # in-kernel boundary masks with a non-trivial S extent).
    xb = jax.random.normal(jax.random.PRNGKey(1), (4, 40, 128), dtype=jnp.float32)
    y3 = jax.block_until_ready(token_mean_pooling(xb, start_idx=3, end_idx=37))
    ref3 = jnp.mean(xb[:, 3:37, :], axis=1)
    assert jnp.allclose(y3, ref3, atol=1e-5, rtol=1e-5)

    print("KERNEL_OK")
</pallas_src>

<mosaic_0001>
module attributes {stable_mosaic.version = 11 : i64} {
  func.func @_mean_pool_kernel(%arg0: i32, %arg1: i32, %arg2: i32, %arg3: memref<2x8x32xf32, #tpu.memory_space<vmem>>, %arg4: memref<2x32xf32, #tpu.memory_space<vmem>>, %arg5: memref<2x32xf32, #tpu.memory_space<vmem>>) attributes {dimension_semantics = [#tpu.dimension_semantics<parallel>, #tpu.dimension_semantics<parallel>, #tpu.dimension_semantics<arbitrary>], iteration_bounds = array<i64: 1, 1, 1>, scalar_prefetch = 0 : i64, scratch_operands = 1 : i64, tpu.core_type = #tpu.core_type<tc>, window_params = [{transform_indices = @transform_0, window_bounds = array<i64: 2, 8, 32>}, {transform_indices = @transform_1, window_bounds = array<i64: 2, 32>}]} {
    %c0_i32 = arith.constant 0 : i32
    %0 = arith.cmpi eq, %arg2, %c0_i32 : i32
    %1 = arith.extui %0 : i1 to i32
    %c0_i32_0 = arith.constant 0 : i32
    %2 = arith.cmpi ne, %1, %c0_i32_0 : i32
    scf.if %2 {
      %cst_12 = arith.constant 0.000000e+00 : f32
      %23 = vector.broadcast %cst_12 : f32 to vector<2x32xf32>
      %c0_13 = arith.constant 0 : index
      %c0_14 = arith.constant 0 : index
      %24 = vector.load %arg5[%c0_13, %c0_14] : memref<2x32xf32, #tpu.memory_space<vmem>>, vector<2x32xf32>
      tpu.vector_store %arg5[%c0_13, %c0_14], %23 {strides = array<i32>} : memref<2x32xf32, #tpu.memory_space<vmem>>, vector<2x32xf32>,
    } else {
    }
    %c0 = arith.constant 0 : index
    %c0_1 = arith.constant 0 : index
    %c0_2 = arith.constant 0 : index
    %3 = vector.load %arg3[%c0, %c0_1, %c0_2] : memref<2x8x32xf32, #tpu.memory_space<vmem>>, vector<2x8x32xf32>
    %c0_i32_3 = arith.constant 0 : i32
    %4 = arith.addi %c0_i32_3, %arg2 : i32
    %c8_i32 = arith.constant 8 : i32
    %5 = arith.muli %4, %c8_i32 : i32
    %6 = tpu.iota {dimensions = array<i32: 1>} : vector<2x8x32xi32>
    %7 = vector.broadcast %5 : i32 to vector<2x8x32xi32>
    %8 = arith.addi %6, %7 : vector<2x8x32xi32>
    %c1_i32 = arith.constant 1 : i32
    %9 = vector.broadcast %c1_i32 : i32 to vector<2x8x32xi32>
    %10 = arith.cmpi sge, %8, %9 : vector<2x8x32xi32>
    %c8_i32_4 = arith.constant 8 : i32
    %11 = vector.broadcast %c8_i32_4 : i32 to vector<2x8x32xi32>
    %12 = arith.cmpi slt, %8, %11 : vector<2x8x32xi32>
    %13 = arith.andi %10, %12 : vector<2x8x32xi1>
    %cst = arith.constant 0.000000e+00 : f32
    %14 = vector.broadcast %cst : f32 to vector<2x8x32xf32>
    %15 = arith.select %13, %3, %14 : vector<2x8x32xi1>, vector<2x8x32xf32>
    %c0_5 = arith.constant 0 : index
    %c0_6 = arith.constant 0 : index
    %16 = vector.load %arg5[%c0_5, %c0_6] : memref<2x32xf32, #tpu.memory_space<vmem>>, vector<2x32xf32>
    %cst_7 = arith.constant dense<0.000000e+00> : vector<2x32xf32>
    %17 = vector.multi_reduction <add>, %15, %cst_7 [1] : vector<2x8x32xf32> to vector<2x32xf32>
    %18 = arith.addf %16, %17 : vector<2x32xf32>
    %c0_8 = arith.constant 0 : index
    %c0_9 = arith.constant 0 : index
    %19 = vector.load %arg5[%c0_8, %c0_9] : memref<2x32xf32, #tpu.memory_space<vmem>>, vector<2x32xf32>
    tpu.vector_store %arg5[%c0_8, %c0_9], %18 {strides = array<i32>} : memref<2x32xf32, #tpu.memory_space<vmem>>, vector<2x32xf32>,
    %c0_i32_10 = arith.constant 0 : i32
    %20 = arith.cmpi eq, %arg2, %c0_i32_10 : i32
    %21 = arith.extui %20 : i1 to i32
    %c0_i32_11 = arith.constant 0 : i32
    %22 = arith.cmpi ne, %21, %c0_i32_11 : i32
    scf.if %22 {
      %c0_12 = arith.constant 0 : index
      %c0_13 = arith.constant 0 : index
      %23 = vector.load %arg5[%c0_12, %c0_13] : memref<2x32xf32, #tpu.memory_space<vmem>>, vector<2x32xf32>
      %cst_14 = arith.constant 0.142857149 : f32
      %24 = vector.broadcast %cst_14 : f32 to vector<2x32xf32>
      %25 = arith.mulf %23, %24 : vector<2x32xf32>
      %c0_15 = arith.constant 0 : index
      %c0_16 = arith.constant 0 : index
      %26 = vector.load %arg4[%c0_15, %c0_16] : memref<2x32xf32, #tpu.memory_space<vmem>>, vector<2x32xf32>
      tpu.vector_store %arg4[%c0_15, %c0_16], %25 {strides = array<i32>} : memref<2x32xf32, #tpu.memory_space<vmem>>, vector<2x32xf32>,
    } else {
    }
    return
  }
  func.func @transform_0(%arg0: i32, %arg1: i32, %arg2: i32) -> (i32, i32, i32) {
    %c0_i32 = arith.constant 0 : i32
    %0 = arith.addi %c0_i32, %arg2 : i32
    %c0_i32_0 = arith.constant 0 : i32
    return %arg0, %0, %arg1 : i32, i32, i32
  }
  func.func @transform_1(%arg0: i32, %arg1: i32, %arg2: i32) -> (i32, i32) {
    %c0_i32 = arith.constant 0 : i32
    return %arg0, %arg1 : i32, i32
  }
}

</mosaic_0001>

<llo_original>
// kernel: tpu_custom_call.1
$region0: #{tpu_custom_call.1}
  #allocation0 [shape = 'u32[]', space=smem, size = 0x4, offset = 0x4, fixed_abs, tag = 'smem constant byte address 0x4 - core index']
  #allocation1 [shape = 'u32[144,128]{1,0:T(1,128)}', space=vmem, size = 0x12000, scoped, tag = 'internal scratch']
  #allocation2 [shape = 'f32[2,32]{1,0:T(2,128)}', space=vmem, size = 0x400, scoped, tag = 'scratch operand']
  %s0 = inlined_call_operand.hbm [shape: f32[2,8,32], index: 0, kind: input, shape index: {}]
  %s1 = inlined_call_operand.hbm [shape: f32[2,32], index: 1, kind: output, shape index: {}]
  %s2 = sld [smem:[#allocation0]]
  $region26: #{tpu_custom_call.1} parent=0
    _
  %s4 = ssub.s32 1, %s2
  %s5 = scalar_select 0, %s4, %s2
  $region1: #{tpu_custom_call.1} parent=0
    #allocation3 [shape = 'u8[8192]{0}', space=vmem, size = 0x2000, scoped, tag = 'input window, operand 0, single buffered']
    #allocation4 [shape = 's32[1]{0}', space=sflag, size = 0x4, scoped, tag = 'scoped memory for tpu_custom_call.1']
    #allocation5 [shape = 's32[1]{0}', space=sflag, size = 0x4, scoped, tag = 'scoped memory for tpu_custom_call.1']
    #allocation6 [shape = 'u8[1024]{0}', space=vmem, size = 0x400, scoped, tag = 'output window, operand 0, single buffered']
    %6 = vsyncpa [#allocation4], 0
    %7 = vsyncpa [#allocation5], 0
    // Predicated region
    $region2: #{tpu_custom_call.1} parent=1 // pred_check
      _
    $region3: #{tpu_custom_call.1} parent=1 // pred_check_branch
      %9 = sbr.rel (0) target = $region5
    $region4: #{tpu_custom_call.1} parent=1 // pred_region
      %s11 = ssub.s32 256, 256
      %12 = vsyncadd [#allocation4], %s11
      %s13 = sshll.u32 [#allocation3], 4
      %s14 = int_to_ptr.vmem [resolvable:$true] %s13
      %19 = dma.hbm_to_vmem [thread:$0]  %s0, 256, %s14, [#allocation4], 128, 128, 8
    $region5: #{tpu_custom_call.1} parent=1 // pred_fallthru
      _
    // Predicated region
    $region6: #{tpu_custom_call.1} parent=1 // pred_check
      _
    $region7: #{tpu_custom_call.1} parent=1 // pred_check_branch
      %21 = sbr.rel (0) target = $region9
    $region8: #{tpu_custom_call.1} parent=1 // pred_region
      %22 = dma.done [#allocation4], 256
    $region9: #{tpu_custom_call.1} parent=1 // pred_fallthru
      _
    %p23 = scmp.eq.s32.totalorder 0, 0
    // Predicated region
    $region10: #{tpu_custom_call.1} parent=1 // pred_check
      %p24 = pneg %p23
    $region11: #{tpu_custom_call.1} parent=1 // pred_check_branch
      %26 = sbr.rel (%p24) target = $region13
    $region12: #{tpu_custom_call.1} parent=1 // pred_region
      %vm27 = vcmask 254976
      %28 = vst.msk [vmem:[#allocation2] sm:$0x3] %vm27, 0.0
    $region13: #{tpu_custom_call.1} parent=1 // pred_fallthru
      _
    %v29 = vld [vmem:[#allocation3] sm:$0xff]
    %v30 = vld [vmem:[#allocation3 + $0x8] sm:$0xff]
    %s31 = smul.u32 0, 8
    %v32 = vlaneseq
    %v33 = vshrl.u32 %v32, 7
    %v34 = vstv %s31
    %v35 = vadd.s32 %v33, %v34
    %vm36 = vcmp.ge.s32.totalorder %v35, 1
    %vm37 = vcmp.lt.s32.totalorder %v35, 8
    %vm38 = vmand %vm36, %vm37
    %v39 = vsel %vm38, %v29, 0.0
    %v40 = vsel %vm38, %v30, 0.0
    %v41 = vld [vmem:[#allocation2] sm:$0x3]
    %vm42 = vcmask 261120
    %v43 = vsel %vm42, %v39, 0.0
    %v44 = vrot.slane %v43, 4
    %v45 = vadd.f32 %v43, %v44
    %v46 = vrot.slane %v45, 2
    %v47 = vadd.f32 %v45, %v46
    %v48 = vrot.slane %v47, 1
    %v49 = vadd.f32 %v47, %v48
    %v50 = vsel %vm42, %v40, 0.0
    %v51 = vrot.slane %v50, 4
    %v52 = vadd.f32 %v50, %v51
    %v53 = vrot.slane %v52, 2
    %v54 = vadd.f32 %v52, %v53
    %v55 = vrot.slane %v54, 1
    %v56 = vadd.f32 %v54, %v55
    %vm59 = vcmask 1041409
    %v60 = vsel %vm59, %v56, %v49
    %v62 = vadd.f32 %v41, %v60
    %vm63 = vcmask 254976
    %64 = vst.msk [vmem:[#allocation2] sm:$0x3] %vm63, %v62
    // Predicated region
    $region14: #{tpu_custom_call.1} parent=1 // pred_check
      %p65 = pneg %p23
    $region15: #{tpu_custom_call.1} parent=1 // pred_check_branch
      %67 = sbr.rel (%p65) target = $region17
    $region16: #{tpu_custom_call.1} parent=1 // pred_region
      %v68 = vld [vmem:[#allocation2] sm:$0x3]
      %v69 = vmul.f32 %v68, 0.14285715
      %70 = vst.msk [vmem:[#allocation6] sm:$0x3] %vm63, %v69
    $region17: #{tpu_custom_call.1} parent=1 // pred_fallthru
      _
    // Predicated region
    $region18: #{tpu_custom_call.1} parent=1 // pred_check
      _
    $region19: #{tpu_custom_call.1} parent=1 // pred_check_branch
      %72 = sbr.rel (0) target = $region21
    $region20: #{tpu_custom_call.1} parent=1 // pred_region
      %s74 = ssub.s32 32, 32
      %75 = vsyncadd [#allocation5], %s74
      %s77 = sshll.u32 [#allocation6], 4
      %s78 = int_to_ptr.vmem [resolvable:$true] %s77
      %80 = dma.vmem_to_hbm [thread:$0]  %s78, 32, %s1, [#allocation5]
    $region21: #{tpu_custom_call.1} parent=1 // pred_fallthru
      _
    // Predicated region
    $region22: #{tpu_custom_call.1} parent=1 // pred_check
      _
    $region23: #{tpu_custom_call.1} parent=1 // pred_check_branch
      %82 = sbr.rel (0) target = $region25
    $region24: #{tpu_custom_call.1} parent=1 // pred_region
      %83 = dma.done [#allocation5], 32
    $region25: #{tpu_custom_call.1} parent=1 // pred_fallthru
      _
    %84 = vsyncpa [#allocation4], 1
    %85 = vsyncpa [#allocation5], 1

</llo_original>
